<compile_context>
chip_gen: v7x
topology: tpu7x:2x2x1
jax: 0.10.0
libtpu: 0.0.40
codegen_flags: <defaults>
</compile_context>

<pallas_src>
import math

import jax
import jax.numpy as jnp
from jax import lax
from jax.experimental import pallas as pl
from jax.experimental.pallas import tpu as pltpu


# ---------------------------------------------------------------------------
# Kernels (weights are K-major: (tk, tn) tiles; f32 accumulator scratch)
# ---------------------------------------------------------------------------

def _noisy_factorized_kernel(x_ref, wmu_ref, wsig_ref, fin_ref, fout_ref,
                             bias_ref, o_ref, acc_ref):
    """Training path, factorized noise.  The epsilon tile is rebuilt in-kernel
    as a rank-1 outer product (tk,1)*(1,tn) on the VPU, so only two small
    noise vectors travel from HBM instead of a third weight-sized matrix."""
    k = pl.program_id(2)

    @pl.when(k == 0)
    def _init():
        acc_ref[...] = jnp.zeros_like(acc_ref)

    w = wmu_ref[...] + wsig_ref[...] * (fin_ref[...] * fout_ref[...])
    acc_ref[...] += lax.dot_general(
        x_ref[...], w,
        dimension_numbers=(((1,), (0,)), ((), ())),
        preferred_element_type=jnp.float32)

    @pl.when(k == pl.num_programs(2) - 1)
    def _finalize():
        o_ref[...] = (acc_ref[...] + bias_ref[...]).astype(o_ref.dtype)


def _noisy_generic_kernel(x_ref, wmu_ref, wsig_ref, weps_ref,
                          bias_ref, o_ref, acc_ref):
    """Training path with a materialized epsilon matrix (non-factorized noise)."""
    k = pl.program_id(2)

    @pl.when(k == 0)
    def _init():
        acc_ref[...] = jnp.zeros_like(acc_ref)

    w = wmu_ref[...] + wsig_ref[...] * weps_ref[...]
    acc_ref[...] += lax.dot_general(
        x_ref[...], w,
        dimension_numbers=(((1,), (0,)), ((), ())),
        preferred_element_type=jnp.float32)

    @pl.when(k == pl.num_programs(2) - 1)
    def _finalize():
        o_ref[...] = (acc_ref[...] + bias_ref[...]).astype(o_ref.dtype)


def _mu_linear_kernel(x_ref, wmu_ref, bias_ref, o_ref, acc_ref):
    """Eval path: plain linear with mean parameters only."""
    k = pl.program_id(2)

    @pl.when(k == 0)
    def _init():
        acc_ref[...] = jnp.zeros_like(acc_ref)

    acc_ref[...] += lax.dot_general(
        x_ref[...], wmu_ref[...],
        dimension_numbers=(((1,), (0,)), ((), ())),
        preferred_element_type=jnp.float32)

    @pl.when(k == pl.num_programs(2) - 1)
    def _finalize():
        o_ref[...] = (acc_ref[...] + bias_ref[...]).astype(o_ref.dtype)


# ---------------------------------------------------------------------------
# One-time parameter preparation (hoists padding / transpose / cast out of the
# per-step forward)
# ---------------------------------------------------------------------------

def _round_up(x, m):
    return ((x + m - 1) // m) * m


def prepare_noisy_linear_params(params, *, tn=None, tk=None,
                                compute_dtype=jnp.bfloat16,
                                prepare_generic_eps=None):
    """Pad (to tile multiples), transpose to K-major (in, out) and cast the
    persistent NoisyLinear parameters ONCE.  Also pre-folds
    bias_eff = bias_mu + bias_sigma * bias_epsilon (kept in f32).

    Re-run this after every sample_noise() / optimizer step if parameters or
    noise buffers change — it is still one weight-sized pass instead of one
    per forward call."""
    wmu = jnp.asarray(params["weight_mu"])
    OUT, IN = wmu.shape

    # N/K tile sizes; params are padded to multiples of these once.
    # tn <= 256 and forced to give >= 2 N-blocks whenever OUT > 128 so both
    # v7x TensorCores get work even at grid (1, N, K).
    if tn is None:
        tn = min(_round_up(OUT, 128), 256)
        if OUT > 128 and _round_up(OUT, tn) // tn < 2:
            tn = 128
    if tk is None:
        tk = min(_round_up(IN, 128), 2048)

    OUTp = _round_up(OUT, tn)
    INp = _round_up(IN, tk)

    def pad_t(w):  # (OUT, IN) -> K-major (INp, OUTp)
        return jnp.pad(jnp.asarray(w).T, ((0, INp - IN), (0, OUTp - OUT)))

    def pad_row(b):  # (OUT,) -> (1, OUTp)
        return jnp.pad(jnp.asarray(b).reshape(1, OUT), ((0, 0), (0, OUTp - OUT)))

    cd = jnp.dtype(compute_dtype)
    prep = dict(
        in_features=IN, out_features=OUT, tn=tn, tk=tk, compute_dtype=cd,
        wmu_t=pad_t(params["weight_mu"]).astype(cd),
        wsig_t=pad_t(params["weight_sigma"]).astype(cd),
        bias_mu_p=pad_row(params["bias_mu"]).astype(jnp.float32),
        bias_eff=pad_row(params["bias_mu"]
                         + params["bias_sigma"] * params["bias_epsilon"]
                         ).astype(jnp.float32),
        f_in=None, f_out=None, weps_t=None,
    )

    factorized = ("weight_eps_in" in params) and ("weight_eps_out" in params)
    if factorized:
        fin = jnp.pad(jnp.asarray(params["weight_eps_in"]).reshape(IN, 1),
                      ((0, INp - IN), (0, 0)))
        fout = jnp.pad(jnp.asarray(params["weight_eps_out"]).reshape(1, OUT),
                       ((0, 0), (0, OUTp - OUT)))
        prep["f_in"] = fin.astype(cd)
        prep["f_out"] = fout.astype(cd)

    if prepare_generic_eps is None:
        prepare_generic_eps = not factorized
    if prepare_generic_eps and "weight_epsilon" in params:
        prep["weps_t"] = pad_t(params["weight_epsilon"]).astype(cd)

    return prep


# ---------------------------------------------------------------------------
# Forward
# ---------------------------------------------------------------------------

def _xla_forward(x, prep, training, use_factorized_eps):
    """Small-problem fallback: a pallas_call on a <=1-tile layer is pure
    fixed launch/DMA overhead, so just use XLA with the prepared params."""
    cd = prep["compute_dtype"]
    IN, OUT = prep["in_features"], prep["out_features"]
    xc = x.astype(cd)
    if not training:
        w = prep["wmu_t"][:IN, :OUT]
        b = prep["bias_mu_p"][0, :OUT]
    else:
        wmu = prep["wmu_t"][:IN, :OUT]
        wsig = prep["wsig_t"][:IN, :OUT]
        if use_factorized_eps and prep["f_in"] is not None:
            eps = prep["f_in"][:IN] * prep["f_out"][:, :OUT]
        else:
            eps = prep["weps_t"][:IN, :OUT]
        w = wmu + wsig * eps
        b = prep["bias_eff"][0, :OUT]
    y = jnp.dot(xc, w, preferred_element_type=jnp.float32) + b
    return y.astype(x.dtype)


def noisy_linear(x, prep, *, training=True, use_factorized_eps=True,
                 tb=None, use_pallas="auto"):
    """Forward pass of NoisyLinear (bias=True) on prepared params.

    x    : (B, in_features)
    prep : output of prepare_noisy_linear_params()
    """
    B, IN = x.shape
    assert IN == prep["in_features"], "x feature dim mismatch"
    OUT = prep["out_features"]
    INp, OUTp = prep["wmu_t"].shape
    tn, tk = prep["tn"], prep["tk"]
    cd = prep["compute_dtype"]
    out_dtype = x.dtype

    if use_pallas == "auto":
        use_pallas = INp * OUTp >= 128 * 256
    if not use_pallas:
        return _xla_forward(x, prep, training, use_factorized_eps)

    # Large batch tiles: weights are re-streamed once per M-tile, so a bigger
    # tb directly cuts weight HBM traffic for big batches.
    if tb is None:
        tb = min(_round_up(B, 8), 512)
    Bp = _round_up(B, tb)

    # Per-call padding is activation-sized only (weights were padded once).
    xp = jnp.pad(x, ((0, Bp - B), (0, INp - IN))).astype(cd)

    grid = (Bp // tb, OUTp // tn, INp // tk)

    x_spec = pl.BlockSpec((tb, tk), lambda i, j, k: (i, k))
    w_spec = pl.BlockSpec((tk, tn), lambda i, j, k: (k, j))      # K-major RHS
    fin_spec = pl.BlockSpec((tk, 1), lambda i, j, k: (k, 0))
    fout_spec = pl.BlockSpec((1, tn), lambda i, j, k: (0, j))
    b_spec = pl.BlockSpec((1, tn), lambda i, j, k: (0, j))
    o_spec = pl.BlockSpec((tb, tn), lambda i, j, k: (i, j))

    isz = jnp.dtype(cd).itemsize
    osz = jnp.dtype(out_dtype).itemsize

    if not training:
        kernel = _mu_linear_kernel
        operands = (xp, prep["wmu_t"], prep["bias_mu_p"])
        in_specs = [x_spec, w_spec, b_spec]
        n_wmats = 1
        blk_bytes = tb * tk * isz + tk * tn * isz + tn * 4
    elif use_factorized_eps and prep["f_in"] is not None:
        kernel = _noisy_factorized_kernel
        operands = (xp, prep["wmu_t"], prep["wsig_t"],
                    prep["f_in"], prep["f_out"], prep["bias_eff"])
        in_specs = [x_spec, w_spec, w_spec, fin_spec, fout_spec, b_spec]
        n_wmats = 2
        blk_bytes = tb * tk * isz + 2 * tk * tn * isz + (tk + tn) * isz + tn * 4
    else:
        if prep["weps_t"] is None:
            raise ValueError("generic epsilon path requested but weight_epsilon "
                             "was not prepared (prepare_generic_eps=True)")
        kernel = _noisy_generic_kernel
        operands = (xp, prep["wmu_t"], prep["wsig_t"], prep["weps_t"],
                    prep["bias_eff"])
        in_specs = [x_spec, w_spec, w_spec, w_spec, b_spec]
        n_wmats = 3
        blk_bytes = tb * tk * isz + 3 * tk * tn * isz + tn * 4

    blk_bytes += tb * tn * osz                 # output tile
    acc_bytes = tb * tn * 4                    # f32 accumulator scratch
    # Double-buffered working set + accumulator + headroom; with the default
    # tile caps this stays far below v7x's 64 MiB/TC budget.
    vmem_limit = int(min(max(2 * blk_bytes + acc_bytes + (4 << 20), 32 << 20),
                         112 << 20))

    cost = pl.CostEstimate(
        flops=2 * Bp * INp * OUTp,
        transcendentals=0,
        bytes_accessed=(Bp * INp * isz * (OUTp // tn)              # x per N-tile
                        + n_wmats * INp * OUTp * isz * (Bp // tb)  # W per M-tile
                        + Bp * OUTp * osz + OUTp * 4))

    out = pl.pallas_call(
        kernel,
        out_shape=jax.ShapeDtypeStruct((Bp, OUTp), out_dtype),
        grid_spec=pltpu.PrefetchScalarGridSpec(
            num_scalar_prefetch=0, grid=grid,
            in_specs=in_specs, out_specs=o_spec,
            scratch_shapes=[pltpu.VMEM((tb, tn), jnp.float32)]),
        compiler_params=pltpu.CompilerParams(
            dimension_semantics=("parallel", "parallel", "arbitrary"),
            vmem_limit_bytes=vmem_limit),
        cost_estimate=cost,
    )(*operands)
    return out[:B, :OUT]


# ---------------------------------------------------------------------------
# Parameter init mirroring NoisyLinear.reset_parameters() + sample_noise()
# ---------------------------------------------------------------------------

def init_noisy_linear_params(key, in_features, out_features,
                             factorized_noise=True, sigma_init=None):
    if sigma_init is None:
        sigma_init = 0.5 if factorized_noise else 0.017

    mu_range = (math.sqrt(1.0 / in_features) if factorized_noise
                else math.sqrt(3.0 / in_features))
    sigma_val = (sigma_init / math.sqrt(out_features) if factorized_noise
                 else sigma_init)

    k_wmu, k_bmu, k_nout, k_nin, k_beps = jax.random.split(key, 5)

    weight_mu = jax.random.uniform(
        k_wmu, (out_features, in_features),
        minval=-mu_range, maxval=mu_range, dtype=jnp.float32)
    weight_sigma = jnp.full((out_features, in_features), sigma_val, jnp.float32)
    bias_mu = jax.random.uniform(
        k_bmu, (out_features,), minval=-mu_range, maxval=mu_range,
        dtype=jnp.float32)
    bias_sigma = jnp.full((out_features,), sigma_val, jnp.float32)

    params = dict(weight_mu=weight_mu, weight_sigma=weight_sigma,
                  bias_mu=bias_mu, bias_sigma=bias_sigma)

    if factorized_noise:
        noise_out = jax.random.normal(k_nout, (out_features,), jnp.float32)
        noise_in = jax.random.normal(k_nin, (in_features,), jnp.float32)
        # sign(a*b)*sqrt(|a*b|) == f(a)*f(b) with f(x)=sign(x)*sqrt(|x|), so the
        # full epsilon matrix is exactly the outer product of the transformed
        # vectors (same math as torch.ger followed by sign*sqrt).
        f_out = jnp.sign(noise_out) * jnp.sqrt(jnp.abs(noise_out))
        f_in = jnp.sign(noise_in) * jnp.sqrt(jnp.abs(noise_in))
        params["weight_eps_out"] = f_out
        params["weight_eps_in"] = f_in
        params["weight_epsilon"] = jnp.outer(f_out, f_in)
        # rl/nn.py samples a fresh (untransformed) normal for bias_epsilon.
        params["bias_epsilon"] = jax.random.normal(
            k_beps, (out_features,), jnp.float32)
    else:
        params["weight_epsilon"] = jax.random.normal(
            k_nout, (out_features, in_features), jnp.float32)
        params["bias_epsilon"] = jax.random.normal(
            k_beps, (out_features,), jnp.float32)

    return params


# ---------------------------------------------------------------------------
# Self-test
# ---------------------------------------------------------------------------

if __name__ == "__main__":
    key = jax.random.PRNGKey(0)
    k_x, k_p, k_x2, k_p2 = jax.random.split(key, 4)

    # --- primary small case (typical RL hidden sizes) ------------------------
    batch, in_features, out_features = 8, 32, 32
    x = jax.random.normal(k_x, (batch, in_features), jnp.float32)
    params = init_noisy_linear_params(k_p, in_features, out_features)
    prep = prepare_noisy_linear_params(params, prepare_generic_eps=True)

    # Force the Pallas path to exercise all three kernels.
    y_fact = noisy_linear(x, prep, training=True, use_factorized_eps=True,
                          use_pallas=True)
    y_gen = noisy_linear(x, prep, training=True, use_factorized_eps=False,
                         use_pallas=True)
    y_eval = noisy_linear(x, prep, training=False, use_pallas=True)
    # "auto" dispatch falls back to XLA for this tiny layer.
    y_auto = noisy_linear(x, prep, training=True)
    jax.block_until_ready((y_fact, y_gen, y_eval, y_auto))

    w_eff = params["weight_mu"] + params["weight_sigma"] * params["weight_epsilon"]
    b_eff = params["bias_mu"] + params["bias_sigma"] * params["bias_epsilon"]
    ref_train = x @ w_eff.T + b_eff
    ref_eval = x @ params["weight_mu"].T + params["bias_mu"]
    # bf16 compute dtype -> loose-ish tolerances.
    assert jnp.allclose(y_fact, ref_train, atol=3e-2, rtol=3e-2)
    assert jnp.allclose(y_gen, ref_train, atol=3e-2, rtol=3e-2)
    assert jnp.allclose(y_eval, ref_eval, atol=3e-2, rtol=3e-2)
    assert jnp.allclose(y_auto, ref_train, atol=3e-2, rtol=3e-2)

    # --- ragged case exercising padding + multi-tile (M, N, K) accumulation --
    b2, in2, out2 = 20, 300, 200
    x2 = jax.random.normal(k_x2, (b2, in2), jnp.float32)
    p2 = init_noisy_linear_params(k_p2, in2, out2)
    prep2 = prepare_noisy_linear_params(p2, tn=128, tk=128,
                                        prepare_generic_eps=True)

    y2_fact = noisy_linear(x2, prep2, training=True, use_factorized_eps=True,
                           tb=8, use_pallas=True)     # grid (3, 2, 3)
    y2_eval = noisy_linear(x2, prep2, training=False, use_pallas=True)
    jax.block_until_ready((y2_fact, y2_eval))

    w2 = p2["weight_mu"] + p2["weight_sigma"] * p2["weight_epsilon"]
    b2e = p2["bias_mu"] + p2["bias_sigma"] * p2["bias_epsilon"]
    ref2_train = x2 @ w2.T + b2e
    ref2_eval = x2 @ p2["weight_mu"].T + p2["bias_mu"]
    assert jnp.allclose(y2_fact, ref2_train, atol=5e-2, rtol=5e-2)
    assert jnp.allclose(y2_eval, ref2_eval, atol=5e-2, rtol=5e-2)

    print("KERNEL_OK")
</pallas_src>

<mosaic_0001>
module attributes {stable_mosaic.version = 11 : i64} {
  func.func @_noisy_factorized_kernel(%arg0: i32, %arg1: i32, %arg2: i32, %arg3: memref<8x128xbf16, #tpu.memory_space<vmem>>, %arg4: memref<128x128xbf16, #tpu.memory_space<vmem>>, %arg5: memref<128x128xbf16, #tpu.memory_space<vmem>>, %arg6: memref<128x1xbf16, #tpu.memory_space<vmem>>, %arg7: memref<1x128xbf16, #tpu.memory_space<vmem>>, %arg8: memref<1x128xf32, #tpu.memory_space<vmem>>, %arg9: memref<8x128xf32, #tpu.memory_space<vmem>>, %arg10: memref<8x128xf32, #tpu.memory_space<vmem>>) attributes {dimension_semantics = [#tpu.dimension_semantics<parallel>, #tpu.dimension_semantics<parallel>, #tpu.dimension_semantics<arbitrary>], iteration_bounds = array<i64: 1, 1, 1>, scalar_prefetch = 0 : i64, scratch_operands = 1 : i64, tpu.core_type = #tpu.core_type<tc>, window_params = [{transform_indices = @transform_0, window_bounds = array<i64: 8, 128>}, {transform_indices = @transform_1, window_bounds = array<i64: 128, 128>}, {transform_indices = @transform_2, window_bounds = array<i64: 128, 128>}, {transform_indices = @transform_3, window_bounds = array<i64: 128, 1>}, {transform_indices = @transform_4, window_bounds = array<i64: 1, 128>}, {transform_indices = @transform_5, window_bounds = array<i64: 1, 128>}, {transform_indices = @transform_6, window_bounds = array<i64: 8, 128>}]} {
    %c0_i32 = arith.constant 0 : i32
    %0 = arith.cmpi eq, %arg2, %c0_i32 : i32
    %1 = arith.extui %0 : i1 to i32
    %c0_i32_0 = arith.constant 0 : i32
    %2 = arith.cmpi ne, %1, %c0_i32_0 : i32
    scf.if %2 {
      %cst_16 = arith.constant 0.000000e+00 : f32
      %20 = vector.broadcast %cst_16 : f32 to vector<8x128xf32>
      %c0_17 = arith.constant 0 : index
      %c0_18 = arith.constant 0 : index
      %21 = vector.load %arg10[%c0_17, %c0_18] : memref<8x128xf32, #tpu.memory_space<vmem>>, vector<8x128xf32>
      tpu.vector_store %arg10[%c0_17, %c0_18], %20 {strides = array<i32>} : memref<8x128xf32, #tpu.memory_space<vmem>>, vector<8x128xf32>,
    } else {
    }
    %c0 = arith.constant 0 : index
    %c0_1 = arith.constant 0 : index
    %3 = vector.load %arg4[%c0, %c0_1] : memref<128x128xbf16, #tpu.memory_space<vmem>>, vector<128x128xbf16>
    %c0_2 = arith.constant 0 : index
    %c0_3 = arith.constant 0 : index
    %4 = vector.load %arg5[%c0_2, %c0_3] : memref<128x128xbf16, #tpu.memory_space<vmem>>, vector<128x128xbf16>
    %c0_4 = arith.constant 0 : index
    %c0_5 = arith.constant 0 : index
    %5 = vector.load %arg6[%c0_4, %c0_5] : memref<128x1xbf16, #tpu.memory_space<vmem>>, vector<128x1xbf16>
    %c0_6 = arith.constant 0 : index
    %c0_7 = arith.constant 0 : index
    %6 = vector.load %arg7[%c0_6, %c0_7] : memref<1x128xbf16, #tpu.memory_space<vmem>>, vector<1x128xbf16>
    %7 = vector.broadcast %5 : vector<128x1xbf16> to vector<128x128xbf16>
    %8 = vector.broadcast %6 : vector<1x128xbf16> to vector<128x128xbf16>
    %9 = arith.mulf %7, %8 : vector<128x128xbf16>
    %10 = arith.mulf %4, %9 : vector<128x128xbf16>
    %11 = arith.addf %3, %10 : vector<128x128xbf16>
    %c0_8 = arith.constant 0 : index
    %c0_9 = arith.constant 0 : index
    %12 = vector.load %arg10[%c0_8, %c0_9] : memref<8x128xf32, #tpu.memory_space<vmem>>, vector<8x128xf32>
    %c0_10 = arith.constant 0 : index
    %c0_11 = arith.constant 0 : index
    %13 = vector.load %arg3[%c0_10, %c0_11] : memref<8x128xbf16, #tpu.memory_space<vmem>>, vector<8x128xbf16>
    %cst = arith.constant dense<0.000000e+00> : vector<8x128xf32>
    %14 = tpu.matmul %13, %11, %cst {dimension_numbers = #tpu.dot_dimension_numbers<[1], [0], [0], [1], [0, 0, 1, 1], [], []>} : vector<8x128xbf16>, vector<128x128xbf16>, vector<8x128xf32> -> vector<8x128xf32>
    %15 = arith.addf %12, %14 : vector<8x128xf32>
    %c0_12 = arith.constant 0 : index
    %c0_13 = arith.constant 0 : index
    %16 = vector.load %arg10[%c0_12, %c0_13] : memref<8x128xf32, #tpu.memory_space<vmem>>, vector<8x128xf32>
    tpu.vector_store %arg10[%c0_12, %c0_13], %15 {strides = array<i32>} : memref<8x128xf32, #tpu.memory_space<vmem>>, vector<8x128xf32>,
    %c0_i32_14 = arith.constant 0 : i32
    %17 = arith.cmpi eq, %arg2, %c0_i32_14 : i32
    %18 = arith.extui %17 : i1 to i32
    %c0_i32_15 = arith.constant 0 : i32
    %19 = arith.cmpi ne, %18, %c0_i32_15 : i32
    scf.if %19 {
      %c0_16 = arith.constant 0 : index
      %c0_17 = arith.constant 0 : index
      %20 = vector.load %arg10[%c0_16, %c0_17] : memref<8x128xf32, #tpu.memory_space<vmem>>, vector<8x128xf32>
      %c0_18 = arith.constant 0 : index
      %c0_19 = arith.constant 0 : index
      %21 = vector.load %arg8[%c0_18, %c0_19] : memref<1x128xf32, #tpu.memory_space<vmem>>, vector<1x128xf32>
      %22 = vector.broadcast %21 : vector<1x128xf32> to vector<8x128xf32>
      %23 = arith.addf %20, %22 : vector<8x128xf32>
      %c0_20 = arith.constant 0 : index
      %c0_21 = arith.constant 0 : index
      %24 = vector.load %arg9[%c0_20, %c0_21] : memref<8x128xf32, #tpu.memory_space<vmem>>, vector<8x128xf32>
      tpu.vector_store %arg9[%c0_20, %c0_21], %23 {strides = array<i32>} : memref<8x128xf32, #tpu.memory_space<vmem>>, vector<8x128xf32>,
    } else {
    }
    return
  }
  func.func @transform_0(%arg0: i32, %arg1: i32, %arg2: i32) -> (i32, i32) {
    %c0_i32 = arith.constant 0 : i32
    return %arg0, %arg2 : i32, i32
  }
  func.func @transform_1(%arg0: i32, %arg1: i32, %arg2: i32) -> (i32, i32) {
    %c0_i32 = arith.constant 0 : i32
    return %arg2, %arg1 : i32, i32
  }
  func.func @transform_2(%arg0: i32, %arg1: i32, %arg2: i32) -> (i32, i32) {
    %c0_i32 = arith.constant 0 : i32
    return %arg2, %arg1 : i32, i32
  }
  func.func @transform_3(%arg0: i32, %arg1: i32, %arg2: i32) -> (i32, i32) {
    %c0_i32 = arith.constant 0 : i32
    %c0_i32_0 = arith.constant 0 : i32
    return %arg2, %c0_i32 : i32, i32
  }
  func.func @transform_4(%arg0: i32, %arg1: i32, %arg2: i32) -> (i32, i32) {
    %c0_i32 = arith.constant 0 : i32
    %c0_i32_0 = arith.constant 0 : i32
    return %c0_i32, %arg1 : i32, i32
  }
  func.func @transform_5(%arg0: i32, %arg1: i32, %arg2: i32) -> (i32, i32) {
    %c0_i32 = arith.constant 0 : i32
    %c0_i32_0 = arith.constant 0 : i32
    return %c0_i32, %arg1 : i32, i32
  }
  func.func @transform_6(%arg0: i32, %arg1: i32, %arg2: i32) -> (i32, i32) {
    %c0_i32 = arith.constant 0 : i32
    return %arg0, %arg1 : i32, i32
  }
}

</mosaic_0001>

<llo_original>
// kernel: tpu_custom_call.1
$region0: #{tpu_custom_call.1}
  #allocation0 [shape = 'u32[]', space=smem, size = 0x4, offset = 0x4, fixed_abs, tag = 'smem constant byte address 0x4 - core index']
  #allocation1 [shape = 'u32[144,128]{1,0:T(1,128)}', space=vmem, size = 0x12000, scoped, tag = 'internal scratch']
  #allocation2 [shape = 'f32[8,128]{1,0:T(8,128)}', space=vmem, size = 0x1000, scoped, tag = 'scratch operand']
  %s0 = inlined_call_operand.vmem [shape: bf16[8,128], index: 0, kind: input, shape index: {}]
  %s1 = inlined_call_operand.vmem [shape: bf16[128,128], index: 1, kind: input, shape index: {}]
  %s2 = inlined_call_operand.hbm [shape: bf16[128,128], index: 2, kind: input, shape index: {}]
  %s3 = inlined_call_operand.vmem [shape: bf16[128,1], index: 3, kind: input, shape index: {}]
  %s4 = inlined_call_operand.vmem [shape: bf16[1,128], index: 4, kind: input, shape index: {}]
  %s5 = inlined_call_operand.vmem [shape: f32[1,128], index: 5, kind: input, shape index: {}]
  %s6 = inlined_call_operand.hbm [shape: f32[8,128], index: 6, kind: output, shape index: {}]
  %s7 = sld [smem:[#allocation0]]
  $region46: #{tpu_custom_call.1} parent=0
    _
  %s9 = ssub.s32 1, %s7
  %s10 = scalar_select 0, %s9, %s7
  $region1: #{tpu_custom_call.1} parent=0
    #allocation3 [shape = 'u8[32768]{0}', space=vmem, size = 0x8000, scoped, tag = 'input window, operand 2, single buffered']
    #allocation4 [shape = 's32[1]{0}', space=sflag, size = 0x4, scoped, tag = 'scoped memory for tpu_custom_call.1']
    #allocation5 [shape = 's32[1]{0}', space=sflag, size = 0x4, scoped, tag = 'scoped memory for tpu_custom_call.1']
    #allocation6 [shape = 'u8[4096]{0}', space=vmem, size = 0x1000, scoped, tag = 'output window, operand 0, single buffered']
    %11 = vsyncpa [#allocation4], 0
    %12 = vsyncpa [#allocation5], 0
    // Predicated region
    $region2: #{tpu_custom_call.1} parent=1 // pred_check
      _
    $region3: #{tpu_custom_call.1} parent=1 // pred_check_branch
      %14 = sbr.rel (0) target = $region5
    $region4: #{tpu_custom_call.1} parent=1 // pred_region
      _
    $region5: #{tpu_custom_call.1} parent=1 // pred_fallthru
      _
    // Predicated region
    $region6: #{tpu_custom_call.1} parent=1 // pred_check
      _
    $region7: #{tpu_custom_call.1} parent=1 // pred_check_branch
      %16 = sbr.rel (0) target = $region9
    $region8: #{tpu_custom_call.1} parent=1 // pred_region
      _
    $region9: #{tpu_custom_call.1} parent=1 // pred_fallthru
      _
    // Predicated region
    $region10: #{tpu_custom_call.1} parent=1 // pred_check
      _
    $region11: #{tpu_custom_call.1} parent=1 // pred_check_branch
      %18 = sbr.rel (0) target = $region13
    $region12: #{tpu_custom_call.1} parent=1 // pred_region
      %s20 = ssub.s32 1024, 1024
      %21 = vsyncadd [#allocation4], %s20
      %s22 = sshll.u32 [#allocation3], 4
      %s23 = int_to_ptr.vmem [resolvable:$true] %s22
      %28 = dma.hbm_to_vmem [thread:$0]  %s2, 1024, %s23, [#allocation4], 64, 64, 4
    $region13: #{tpu_custom_call.1} parent=1 // pred_fallthru
      _
    // Predicated region
    $region14: #{tpu_custom_call.1} parent=1 // pred_check
      _
    $region15: #{tpu_custom_call.1} parent=1 // pred_check_branch
      %30 = sbr.rel (0) target = $region17
    $region16: #{tpu_custom_call.1} parent=1 // pred_region
      _
    $region17: #{tpu_custom_call.1} parent=1 // pred_fallthru
      _
    // Predicated region
    $region18: #{tpu_custom_call.1} parent=1 // pred_check
      _
    $region19: #{tpu_custom_call.1} parent=1 // pred_check_branch
      %32 = sbr.rel (0) target = $region21
    $region20: #{tpu_custom_call.1} parent=1 // pred_region
      _
    $region21: #{tpu_custom_call.1} parent=1 // pred_fallthru
      _
    // Predicated region
    $region22: #{tpu_custom_call.1} parent=1 // pred_check
      _
    $region23: #{tpu_custom_call.1} parent=1 // pred_check_branch
      %34 = sbr.rel (0) target = $region25
    $region24: #{tpu_custom_call.1} parent=1 // pred_region
      _
    $region25: #{tpu_custom_call.1} parent=1 // pred_fallthru
      _
    // Predicated region
    $region26: #{tpu_custom_call.1} parent=1 // pred_check
      _
    $region27: #{tpu_custom_call.1} parent=1 // pred_check_branch
      %36 = sbr.rel (0) target = $region29
    $region28: #{tpu_custom_call.1} parent=1 // pred_region
      %37 = dma.done [#allocation4], 1024
    $region29: #{tpu_custom_call.1} parent=1 // pred_fallthru
      _
    %p39 = scmp.eq.s32.totalorder 0, 0
    // Predicated region
    $region30: #{tpu_custom_call.1} parent=1 // pred_check
      %p40 = pneg %p39
    $region31: #{tpu_custom_call.1} parent=1 // pred_check_branch
      %42 = sbr.rel (%p40) target = $region33
    $region32: #{tpu_custom_call.1} parent=1 // pred_region
      %43 = vst [vmem:[#allocation2] sm:$0xff] 0.0
    $region33: #{tpu_custom_call.1} parent=1 // pred_fallthru
      _
    %v44 = vld [vmem:[%s1] sm:$0xf]
    %v45 = vld [vmem:[%s1 + $0x4] sm:$0xf]
    %v46 = vld [vmem:[%s1 + $0x8] sm:$0xf]
    %v47 = vld [vmem:[%s1 + $0xc] sm:$0xf]
    %v48 = vld [vmem:[%s1 + $0x10] sm:$0xf]
    %v49 = vld [vmem:[%s1 + $0x14] sm:$0xf]
    %v50 = vld [vmem:[%s1 + $0x18] sm:$0xf]
    %v51 = vld [vmem:[%s1 + $0x1c] sm:$0xf]
    %v52 = vld [vmem:[%s1 + $0x20] sm:$0xf]
    %v53 = vld [vmem:[%s1 + $0x24] sm:$0xf]
    %v54 = vld [vmem:[%s1 + $0x28] sm:$0xf]
    %v55 = vld [vmem:[%s1 + $0x2c] sm:$0xf]
    %v56 = vld [vmem:[%s1 + $0x30] sm:$0xf]
    %v57 = vld [vmem:[%s1 + $0x34] sm:$0xf]
    %v58 = vld [vmem:[%s1 + $0x38] sm:$0xf]
    %v59 = vld [vmem:[%s1 + $0x3c] sm:$0xf]
    %v60 = vld [vmem:[#allocation3] sm:$0xf]
    %v61 = vld [vmem:[#allocation3 + $0x4] sm:$0xf]
    %v62 = vld [vmem:[#allocation3 + $0x8] sm:$0xf]
    %v63 = vld [vmem:[#allocation3 + $0xc] sm:$0xf]
    %v64 = vld [vmem:[#allocation3 + $0x10] sm:$0xf]
    %v65 = vld [vmem:[#allocation3 + $0x14] sm:$0xf]
    %v66 = vld [vmem:[#allocation3 + $0x18] sm:$0xf]
    %v67 = vld [vmem:[#allocation3 + $0x1c] sm:$0xf]
    %v68 = vld [vmem:[#allocation3 + $0x20] sm:$0xf]
    %v69 = vld [vmem:[#allocation3 + $0x24] sm:$0xf]
    %v70 = vld [vmem:[#allocation3 + $0x28] sm:$0xf]
    %v71 = vld [vmem:[#allocation3 + $0x2c] sm:$0xf]
    %v72 = vld [vmem:[#allocation3 + $0x30] sm:$0xf]
    %v73 = vld [vmem:[#allocation3 + $0x34] sm:$0xf]
    %v74 = vld [vmem:[#allocation3 + $0x38] sm:$0xf]
    %v75 = vld [vmem:[#allocation3 + $0x3c] sm:$0xf]
    %v76 = vld [vmem:[%s3] sm:$0xf]
    %v77 = vld [vmem:[%s3 + $0x4] sm:$0xf]
    %v78 = vld [vmem:[%s3 + $0x8] sm:$0xf]
    %v79 = vld [vmem:[%s3 + $0xc] sm:$0xf]
    %v80 = vld [vmem:[%s3 + $0x10] sm:$0xf]
    %v81 = vld [vmem:[%s3 + $0x14] sm:$0xf]
    %v82 = vld [vmem:[%s3 + $0x18] sm:$0xf]
    %v83 = vld [vmem:[%s3 + $0x1c] sm:$0xf]
    %v84 = vld [vmem:[%s3 + $0x20] sm:$0xf]
    %v85 = vld [vmem:[%s3 + $0x24] sm:$0xf]
    %v86 = vld [vmem:[%s3 + $0x28] sm:$0xf]
    %v87 = vld [vmem:[%s3 + $0x2c] sm:$0xf]
    %v88 = vld [vmem:[%s3 + $0x30] sm:$0xf]
    %v89 = vld [vmem:[%s3 + $0x34] sm:$0xf]
    %v90 = vld [vmem:[%s3 + $0x38] sm:$0xf]
    %v91 = vld [vmem:[%s3 + $0x3c] sm:$0xf]
    %v92 = vld [vmem:[%s4] sm:$0x1]
    %94 = vset.pattern.permute.xlu0 0
    %95 = vperm.xlu0 %94, %v76
    %v96 = vpop.permute.xlu0 %95
    %v99 = vunpack.c.l.s4 839922192
    %v100 = vunpack.c.0.s8 %v99
    %v101 = vlaneseq
    %v102 = vshrl.u32 %v101, 7
    %v103 = vsub.s32 %v100, %v102
    %v104 = vrot.slane %v96, %v103
    %106 = vset.pattern.permute.xlu0 0
    %107 = vperm.xlu0 %106, %v77
    %v108 = vpop.permute.xlu0 %107
    %v111 = vunpack.c.l.s4 839922192
    %v112 = vunpack.c.0.s8 %v111
    %v113 = vlaneseq
    %v114 = vshrl.u32 %v113, 7
    %v115 = vsub.s32 %v112, %v114
    %v116 = vrot.slane %v108, %v115
    %118 = vset.pattern.permute.xlu0 0
    %119 = vperm.xlu0 %118, %v78
    %v120 = vpop.permute.xlu0 %119
    %v123 = vunpack.c.l.s4 839922192
    %v124 = vunpack.c.0.s8 %v123
    %v125 = vlaneseq
    %v126 = vshrl.u32 %v125, 7
    %v127 = vsub.s32 %v124, %v126
    %v128 = vrot.slane %v120, %v127
    %130 = vset.pattern.permute.xlu0 0
    %131 = vperm.xlu0 %130, %v79
    %v132 = vpop.permute.xlu0 %131
    %v135 = vunpack.c.l.s4 839922192
    %v136 = vunpack.c.0.s8 %v135
    %v137 = vlaneseq
    %v138 = vshrl.u32 %v137, 7
    %v139 = vsub.s32 %v136, %v138
    %v140 = vrot.slane %v132, %v139
    %142 = vset.pattern.permute.xlu0 0
    %143 = vperm.xlu0 %142, %v80
    %v144 = vpop.permute.xlu0 %143
    %v147 = vunpack.c.l.s4 839922192
    %v148 = vunpack.c.0.s8 %v147
    %v149 = vlaneseq
    %v150 = vshrl.u32 %v149, 7
    %v151 = vsub.s32 %v148, %v150
    %v152 = vrot.slane %v144, %v151
    %154 = vset.pattern.permute.xlu0 0
    %155 = vperm.xlu0 %154, %v81
    %v156 = vpop.permute.xlu0 %155
    %v159 = vunpack.c.l.s4 839922192
    %v160 = vunpack.c.0.s8 %v159
    %v161 = vlaneseq
    %v162 = vshrl.u32 %v161, 7
    %v163 = vsub.s32 %v160, %v162
    %v164 = vrot.slane %v156, %v163
    %166 = vset.pattern.permute.xlu0 0
    %167 = vperm.xlu0 %166, %v82
    %v168 = vpop.permute.xlu0 %167
    %v171 = vunpack.c.l.s4 839922192
    %v172 = vunpack.c.0.s8 %v171
    %v173 = vlaneseq
    %v174 = vshrl.u32 %v173, 7
    %v175 = vsub.s32 %v172, %v174
    %v176 = vrot.slane %v168, %v175
    %178 = vset.pattern.permute.xlu0 0
    %179 = vperm.xlu0 %178, %v83
    %v180 = vpop.permute.xlu0 %179
    %v183 = vunpack.c.l.s4 839922192
    %v184 = vunpack.c.0.s8 %v183
    %v185 = vlaneseq
    %v186 = vshrl.u32 %v185, 7
    %v187 = vsub.s32 %v184, %v186
    %v188 = vrot.slane %v180, %v187
    %190 = vset.pattern.permute.xlu0 0
    %191 = vperm.xlu0 %190, %v84
    %v192 = vpop.permute.xlu0 %191
    %v195 = vunpack.c.l.s4 839922192
    %v196 = vunpack.c.0.s8 %v195
    %v197 = vlaneseq
    %v198 = vshrl.u32 %v197, 7
    %v199 = vsub.s32 %v196, %v198
    %v200 = vrot.slane %v192, %v199
    %202 = vset.pattern.permute.xlu0 0
    %203 = vperm.xlu0 %202, %v85
    %v204 = vpop.permute.xlu0 %203
    %v207 = vunpack.c.l.s4 839922192
    %v208 = vunpack.c.0.s8 %v207
    %v209 = vlaneseq
    %v210 = vshrl.u32 %v209, 7
    %v211 = vsub.s32 %v208, %v210
    %v212 = vrot.slane %v204, %v211
    %214 = vset.pattern.permute.xlu0 0
    %215 = vperm.xlu0 %214, %v86
    %v216 = vpop.permute.xlu0 %215
    %v219 = vunpack.c.l.s4 839922192
    %v220 = vunpack.c.0.s8 %v219
    %v221 = vlaneseq
    %v222 = vshrl.u32 %v221, 7
    %v223 = vsub.s32 %v220, %v222
    %v224 = vrot.slane %v216, %v223
    %226 = vset.pattern.permute.xlu0 0
    %227 = vperm.xlu0 %226, %v87
    %v228 = vpop.permute.xlu0 %227
    %v231 = vunpack.c.l.s4 839922192
    %v232 = vunpack.c.0.s8 %v231
    %v233 = vlaneseq
    %v234 = vshrl.u32 %v233, 7
    %v235 = vsub.s32 %v232, %v234
    %v236 = vrot.slane %v228, %v235
    %238 = vset.pattern.permute.xlu0 0
    %239 = vperm.xlu0 %238, %v88
    %v240 = vpop.permute.xlu0 %239
    %v243 = vunpack.c.l.s4 839922192
    %v244 = vunpack.c.0.s8 %v243
    %v245 = vlaneseq
    %v246 = vshrl.u32 %v245, 7
    %v247 = vsub.s32 %v244, %v246
    %v248 = vrot.slane %v240, %v247
    %250 = vset.pattern.permute.xlu0 0
    %251 = vperm.xlu0 %250, %v89
    %v252 = vpop.permute.xlu0 %251
    %v255 = vunpack.c.l.s4 839922192
    %v256 = vunpack.c.0.s8 %v255
    %v257 = vlaneseq
    %v258 = vshrl.u32 %v257, 7
    %v259 = vsub.s32 %v256, %v258
    %v260 = vrot.slane %v252, %v259
    %262 = vset.pattern.permute.xlu0 0
    %263 = vperm.xlu0 %262, %v90
    %v264 = vpop.permute.xlu0 %263
    %v267 = vunpack.c.l.s4 839922192
    %v268 = vunpack.c.0.s8 %v267
    %v269 = vlaneseq
    %v270 = vshrl.u32 %v269, 7
    %v271 = vsub.s32 %v268, %v270
    %v272 = vrot.slane %v264, %v271
    %274 = vset.pattern.permute.xlu0 0
    %275 = vperm.xlu0 %274, %v91
    %v276 = vpop.permute.xlu0 %275
    %v279 = vunpack.c.l.s4 839922192
    %v280 = vunpack.c.0.s8 %v279
    %v281 = vlaneseq
    %v282 = vshrl.u32 %v281, 7
    %v283 = vsub.s32 %v280, %v282
    %v284 = vrot.slane %v276, %v283
    %v286 = vpack.i.b16 %v92, %v92
    %v288 = vlaneseq
    %v289 = vshrl.u32 %v288, 7
    %v290 = vsub.s32 0, %v289
    %v291 = vrot.slane %v286, %v290
    %v293 = vunpack.c.l.b16 %v291
    %v294 = vpack.c.b16 %v293, %v293
    %v296 = vmul.bf16 %v104, %v294
    %v297 = vmul.bf16 %v116, %v294
    %v298 = vmul.bf16 %v128, %v294
    %v299 = vmul.bf16 %v140, %v294
    %v300 = vmul.bf16 %v152, %v294
    %v301 = vmul.bf16 %v164, %v294
    %v302 = vmul.bf16 %v176, %v294
    %v303 = vmul.bf16 %v188, %v294
    %v304 = vmul.bf16 %v200, %v294
    %v305 = vmul.bf16 %v212, %v294
    %v306 = vmul.bf16 %v224, %v294
    %v307 = vmul.bf16 %v236, %v294
    %v308 = vmul.bf16 %v248, %v294
    %v309 = vmul.bf16 %v260, %v294
    %v310 = vmul.bf16 %v272, %v294
    %v311 = vmul.bf16 %v284, %v294
    %v312 = vmul.bf16 %v60, %v296
    %v313 = vmul.bf16 %v61, %v297
    %v314 = vmul.bf16 %v62, %v298
    %v315 = vmul.bf16 %v63, %v299
    %v316 = vmul.bf16 %v64, %v300
    %v317 = vmul.bf16 %v65, %v301
    %v318 = vmul.bf16 %v66, %v302
    %v319 = vmul.bf16 %v67, %v303
    %v320 = vmul.bf16 %v68, %v304
    %v321 = vmul.bf16 %v69, %v305
    %v322 = vmul.bf16 %v70, %v306
    %v323 = vmul.bf16 %v71, %v307
    %v324 = vmul.bf16 %v72, %v308
    %v325 = vmul.bf16 %v73, %v309
    %v326 = vmul.bf16 %v74, %v310
    %v327 = vmul.bf16 %v75, %v311
    %v328 = vadd.bf16 %v44, %v312
    %v329 = vadd.bf16 %v45, %v313
    %v330 = vadd.bf16 %v46, %v314
    %v331 = vadd.bf16 %v47, %v315
    %v332 = vadd.bf16 %v48, %v316
    %v333 = vadd.bf16 %v49, %v317
    %v334 = vadd.bf16 %v50, %v318
    %v335 = vadd.bf16 %v51, %v319
    %v336 = vadd.bf16 %v52, %v320
    %v337 = vadd.bf16 %v53, %v321
    %v338 = vadd.bf16 %v54, %v322
    %v339 = vadd.bf16 %v55, %v323
    %v340 = vadd.bf16 %v56, %v324
    %v341 = vadd.bf16 %v57, %v325
    %v342 = vadd.bf16 %v58, %v326
    %v343 = vadd.bf16 %v59, %v327
    %v344 = vld [vmem:[#allocation2] sm:$0xff]
    %v345 = vld [vmem:[%s0] sm:$0xf]
    %v362 = vunpack.c.l.b16 %v328
    %v363 = vunpack.c.l.b16 %v329
    %v364 = vunpack.c.l.b16 %v330
    %v365 = vunpack.c.l.b16 %v331
    %v366 = vunpack.c.l.b16 %v332
    %v367 = vunpack.c.l.b16 %v333
    %v368 = vunpack.c.l.b16 %v334
    %v369 = vunpack.c.l.b16 %v335
    %v370 = vunpack.c.l.b16 %v336
    %v371 = vunpack.c.l.b16 %v337
    %v372 = vunpack.c.l.b16 %v338
    %v373 = vunpack.c.l.b16 %v339
    %v374 = vunpack.c.l.b16 %v340
    %v375 = vunpack.c.l.b16 %v341
    %v376 = vunpack.c.l.b16 %v342
    %v377 = vunpack.c.l.b16 %v343
    %v378 = vpack.c.b16 %v363, %v362
    %v379 = vpack.c.b16 %v365, %v364
    %v380 = vpack.c.b16 %v367, %v366
    %v381 = vpack.c.b16 %v369, %v368
    %v382 = vpack.c.b16 %v371, %v370
    %v383 = vpack.c.b16 %v373, %v372
    %v384 = vpack.c.b16 %v375, %v374
    %v385 = vpack.c.b16 %v377, %v376
    %394 = vmatprep.subr.bf16.mxu0 0
    %395 = vmatpush1.bf16.msra.mxu0 %v378
    %396 = vmatprep.subr.bf16.mxu0 0
    %397 = vmatpush1.bf16.msra.mxu0 %v379
    %398 = vmatprep.subr.bf16.mxu0 0
    %399 = vmatpush1.bf16.msra.mxu0 %v380
    %400 = vmatprep.subr.bf16.mxu0 0
    %401 = vmatpush1.bf16.msra.mxu0 %v381
    %402 = vmatprep.subr.bf16.mxu0 0
    %403 = vmatpush1.bf16.msra.mxu0 %v382
    %404 = vmatprep.subr.bf16.mxu0 0
    %405 = vmatpush1.bf16.msra.mxu0 %v383
    %406 = vmatprep.subr.bf16.mxu0 0
    %407 = vmatpush1.bf16.msra.mxu0 %v384
    %408 = vmatprep.subr.bf16.mxu0 0
    %409 = vmatpush1.bf16.msra.mxu0 %v385
    %410 = vmatprep.subr.bf16.mxu0 0
    %411 = vmatpush1.bf16.msra.mxu0 0
    %412 = vmatprep.subr.bf16.mxu0 0
    %413 = vmatpush1.bf16.msra.mxu0 0
    %414 = vmatprep.subr.bf16.mxu0 0
    %415 = vmatpush1.bf16.msra.mxu0 0
    %416 = vmatprep.subr.bf16.mxu0 0
    %417 = vmatpush1.bf16.msra.mxu0 0
    %418 = vmatprep.subr.bf16.mxu0 0
    %419 = vmatpush1.bf16.msra.mxu0 0
    %420 = vmatprep.subr.bf16.mxu0 0
    %421 = vmatpush1.bf16.msra.mxu0 0
    %422 = vmatprep.subr.bf16.mxu0 0
    %423 = vmatpush1.bf16.msra.mxu0 0
    %424 = vmatprep.subr.bf16.mxu0 0
    %425 = vmatpush1.bf16.msra.mxu0 0
    %426 = vmatprep.mubr.bf16.mxu0 0
    %427 = vmatmul.mubr.bf16.gmra.mrb[0].mxu0 %v345
    %v428 = vpop.f32.mrb[0].mxu0
    %v429 = vadd.f32 0.0, %v428
    %v430 = vpop.f32.mrb[0].mxu0
    %v431 = vpop.f32.mrb[0].mxu0
    %v432 = vpop.f32.mrb[0].mxu0
    %433 = vdwg.mxu0
    %v434 = vadd.f32 %v344, %v429
    %435 = vst [vmem:[#allocation2] sm:$0xff] %v434
    // Predicated region
    $region34: #{tpu_custom_call.1} parent=1 // pred_check
      %p436 = pneg %p39
    $region35: #{tpu_custom_call.1} parent=1 // pred_check_branch
      %438 = sbr.rel (%p436) target = $region37
    $region36: #{tpu_custom_call.1} parent=1 // pred_region
      %v439 = vld [vmem:[#allocation2] sm:$0xff]
      %v440 = vld [vmem:[%s5] sm:$0x1]
      %v442 = vlaneseq
      %v443 = vshrl.u32 %v442, 7
      %v444 = vsub.s32 0, %v443
      %v445 = vrot.slane %v440, %v444
      %v447 = vadd.f32 %v439, %v445
      %448 = vst [vmem:[#allocation6] sm:$0xff] %v447
    $region37: #{tpu_custom_call.1} parent=1 // pred_fallthru
      _
    // Predicated region
    $region38: #{tpu_custom_call.1} parent=1 // pred_check
      _
    $region39: #{tpu_custom_call.1} parent=1 // pred_check_branch
      %450 = sbr.rel (0) target = $region41
    $region40: #{tpu_custom_call.1} parent=1 // pred_region
      %s452 = ssub.s32 128, 128
      %453 = vsyncadd [#allocation5], %s452
      %s455 = sshll.u32 [#allocation6], 4
      %s456 = int_to_ptr.vmem [resolvable:$true] %s455
      %458 = dma.vmem_to_hbm [thread:$0]  %s456, 128, %s6, [#allocation5]
    $region41: #{tpu_custom_call.1} parent=1 // pred_fallthru
      _
    // Predicated region
    $region42: #{tpu_custom_call.1} parent=1 // pred_check
      _
    $region43: #{tpu_custom_call.1} parent=1 // pred_check_branch
      %460 = sbr.rel (0) target = $region45
    $region44: #{tpu_custom_call.1} parent=1 // pred_region
      %461 = dma.done [#allocation5], 128
    $region45: #{tpu_custom_call.1} parent=1 // pred_fallthru
      _
    %462 = vsyncpa [#allocation4], 1
    %463 = vsyncpa [#allocation5], 1

</llo_original>
